<compile_context>
chip_gen: v6e
topology: v6e:2x2x1
jax: 0.10.0
libtpu: 0.0.40
codegen_flags: <defaults>
</compile_context>

<pallas_src>
import functools
import math

import jax
import jax.numpy as jnp
from jax.experimental import pallas as pl
from jax.experimental.pallas import tpu as pltpu


# Raise scoped VMEM over the 16/32 MiB defaults while staying within every
# generation's physical budget (v7x has only 64 MiB per TensorCore).
_VMEM_LIMIT = 48 * 1024 * 1024


# ---------------------------------------------------------------------------
# Kernel 1: per-head QKV projection (scale folded into q)
# ---------------------------------------------------------------------------
def _qkv_head_proj_kernel(x_ref, wq_ref, wk_ref, wv_ref, bq_ref, bk_ref, bv_ref,
                          q_ref, k_ref, v_ref, *, scale):
    x = x_ref[0]                                           # (tq, C) bf16
    q = (jnp.dot(x, wq_ref[0], preferred_element_type=jnp.float32)
         + bq_ref[0]) * scale                              # scale on (tq, D), not (T, T)
    k = jnp.dot(x, wk_ref[0], preferred_element_type=jnp.float32) + bk_ref[0]
    v = jnp.dot(x, wv_ref[0], preferred_element_type=jnp.float32) + bv_ref[0]
    q_ref[0, 0] = q.astype(q_ref.dtype)
    k_ref[0, 0] = k.astype(k_ref.dtype)
    v_ref[0, 0] = v.astype(v_ref.dtype)


# ---------------------------------------------------------------------------
# Kernel 2: flash-style causal attention for one (batch, head, q-tile)
# ---------------------------------------------------------------------------
def _flash_attn_kernel(q_ref, k_ref, v_ref, o_ref, m_sc, l_sc, acc_sc, *, tq, tk):
    qi = pl.program_id(2)
    ki = pl.program_id(3)
    q_start = qi * tq
    k_start = ki * tk

    @pl.when(ki == 0)
    def _init():
        m_sc[...] = jnp.full_like(m_sc, -jnp.inf)
        l_sc[...] = jnp.zeros_like(l_sc)
        acc_sc[...] = jnp.zeros_like(acc_sc)

    # Skip KV tiles that lie entirely above the causal diagonal.
    @pl.when(k_start <= q_start + (tq - 1))
    def _compute():
        q = q_ref[0, 0]                                    # (tq, D) bf16, pre-scaled
        k = k_ref[0, 0]                                    # (tk, D) bf16
        v = v_ref[0, 0]                                    # (tk, D) bf16
        # q @ k^T without materializing a transpose: contract D of both sides.
        s = jax.lax.dot_general(q, k, (((1,), (1,)), ((), ())),
                                preferred_element_type=jnp.float32)  # (tq, tk) f32
        row = q_start + jax.lax.broadcasted_iota(jnp.int32, (tq, tk), 0)
        col = k_start + jax.lax.broadcasted_iota(jnp.int32, (tq, tk), 1)
        s = jnp.where(col <= row, s, -jnp.inf)             # softmax stays in f32

        m_prev = m_sc[...]
        m_new = jnp.maximum(m_prev, jnp.max(s, axis=-1, keepdims=True))
        alpha = jnp.exp(m_prev - m_new)
        p = jnp.exp(s - m_new)
        l_sc[...] = alpha * l_sc[...] + jnp.sum(p, axis=-1, keepdims=True)
        acc_sc[...] = alpha * acc_sc[...] + jnp.dot(
            p.astype(v.dtype), v, preferred_element_type=jnp.float32)
        m_sc[...] = m_new

    @pl.when(ki == pl.num_programs(3) - 1)
    def _finalize():
        inv_l = pl.reciprocal(l_sc[...], approx=True)      # EUP, not a VPU divide
        o_ref[0, 0] = (acc_sc[...] * inv_l).astype(o_ref.dtype)


# ---------------------------------------------------------------------------
# Kernel 3: output projection, reducing over heads (no concatenate)
# ---------------------------------------------------------------------------
def _out_proj_kernel(y_ref, wp_ref, bp_ref, o_ref, acc_ref):
    h = pl.program_id(2)

    @pl.when(h == 0)
    def _init():
        acc_ref[...] = jnp.zeros_like(acc_ref)

    acc_ref[...] += jnp.dot(y_ref[0, 0], wp_ref[0],
                            preferred_element_type=jnp.float32)

    @pl.when(h == pl.num_programs(2) - 1)
    def _finalize():
        o_ref[0] = (acc_ref[...] + bp_ref[...]).astype(o_ref.dtype)


# ---------------------------------------------------------------------------
# Wrapper
# ---------------------------------------------------------------------------
def self_attention_pallas(x, w_qkv, b_qkv, w_proj, b_proj, n_head,
                          *, q_tile=128, kv_tile=128, compute_dtype=jnp.bfloat16):
    B, T, C = x.shape
    H = n_head
    assert C % H == 0, "n_embd must be divisible by n_head"
    D = C // H
    scale = 1.0 / math.sqrt(D)

    tq = T if T <= q_tile else q_tile
    tk = T if T <= kv_tile else kv_tile
    assert T % tq == 0 and T % tk == 0, "T must be a multiple of the tile size"
    n_tq, n_tk = T // tq, T // tk

    # ---- layout plumbing (wrapper-side reshapes/transposes only) ----
    x_c = x.astype(compute_dtype)
    wq, wk, wv = jnp.split(w_qkv, 3, axis=1)                        # (C, C) each
    wq_h = wq.reshape(C, H, D).transpose(1, 0, 2).astype(compute_dtype)   # (H, C, D)
    wk_h = wk.reshape(C, H, D).transpose(1, 0, 2).astype(compute_dtype)
    wv_h = wv.reshape(C, H, D).transpose(1, 0, 2).astype(compute_dtype)
    bq, bk, bv = jnp.split(b_qkv, 3)
    bq_h = bq.reshape(H, 1, D).astype(jnp.float32)
    bk_h = bk.reshape(H, 1, D).astype(jnp.float32)
    bv_h = bv.reshape(H, 1, D).astype(jnp.float32)
    wp_h = w_proj.reshape(H, D, C).astype(compute_dtype)            # (H, D, C)
    bp2 = b_proj.reshape(1, C).astype(jnp.float32)

    # ---- 1) per-head QKV projection ----
    qkv_shape = jax.ShapeDtypeStruct((B, H, T, D), compute_dtype)
    q_h, k_h, v_h = pl.pallas_call(
        functools.partial(_qkv_head_proj_kernel, scale=scale),
        out_shape=(qkv_shape, qkv_shape, qkv_shape),
        grid_spec=pltpu.PrefetchScalarGridSpec(
            num_scalar_prefetch=0,
            grid=(B, n_tq, H),
            in_specs=[
                pl.BlockSpec((1, tq, C), lambda b, ti, h: (b, ti, 0)),   # x
                pl.BlockSpec((1, C, D), lambda b, ti, h: (h, 0, 0)),     # Wq head
                pl.BlockSpec((1, C, D), lambda b, ti, h: (h, 0, 0)),     # Wk head
                pl.BlockSpec((1, C, D), lambda b, ti, h: (h, 0, 0)),     # Wv head
                pl.BlockSpec((1, 1, D), lambda b, ti, h: (h, 0, 0)),     # bq head
                pl.BlockSpec((1, 1, D), lambda b, ti, h: (h, 0, 0)),     # bk head
                pl.BlockSpec((1, 1, D), lambda b, ti, h: (h, 0, 0)),     # bv head
            ],
            out_specs=[
                pl.BlockSpec((1, 1, tq, D), lambda b, ti, h: (b, h, ti, 0)),
                pl.BlockSpec((1, 1, tq, D), lambda b, ti, h: (b, h, ti, 0)),
                pl.BlockSpec((1, 1, tq, D), lambda b, ti, h: (b, h, ti, 0)),
            ]),
        compiler_params=pltpu.CompilerParams(
            dimension_semantics=("parallel", "parallel", "parallel"),
            vmem_limit_bytes=_VMEM_LIMIT),
    )(x_c, wq_h, wk_h, wv_h, bq_h, bk_h, bv_h)

    # ---- 2) flash attention over (B, H, q-tile, kv-tile) ----
    y_h = pl.pallas_call(
        functools.partial(_flash_attn_kernel, tq=tq, tk=tk),
        out_shape=jax.ShapeDtypeStruct((B, H, T, D), compute_dtype),
        grid_spec=pltpu.PrefetchScalarGridSpec(
            num_scalar_prefetch=0,
            grid=(B, H, n_tq, n_tk),
            in_specs=[
                pl.BlockSpec((1, 1, tq, D), lambda b, h, qi, ki: (b, h, qi, 0)),
                pl.BlockSpec((1, 1, tk, D), lambda b, h, qi, ki: (b, h, ki, 0)),
                pl.BlockSpec((1, 1, tk, D), lambda b, h, qi, ki: (b, h, ki, 0)),
            ],
            out_specs=pl.BlockSpec((1, 1, tq, D), lambda b, h, qi, ki: (b, h, qi, 0)),
            scratch_shapes=[
                pltpu.VMEM((tq, 1), jnp.float32),   # running max
                pltpu.VMEM((tq, 1), jnp.float32),   # running sum
                pltpu.VMEM((tq, D), jnp.float32),   # output accumulator
            ]),
        compiler_params=pltpu.CompilerParams(
            dimension_semantics=("parallel", "parallel", "parallel", "arbitrary"),
            vmem_limit_bytes=_VMEM_LIMIT),
    )(q_h, k_h, v_h)

    # ---- 3) output projection, reducing over heads ----
    out = pl.pallas_call(
        _out_proj_kernel,
        out_shape=jax.ShapeDtypeStruct((B, T, C), x.dtype),
        grid_spec=pltpu.PrefetchScalarGridSpec(
            num_scalar_prefetch=0,
            grid=(B, n_tq, H),
            in_specs=[
                pl.BlockSpec((1, 1, tq, D), lambda b, ti, h: (b, h, ti, 0)),  # y head
                pl.BlockSpec((1, D, C), lambda b, ti, h: (h, 0, 0)),          # Wproj head rows
                pl.BlockSpec((1, C), lambda b, ti, h: (0, 0)),                # bias
            ],
            out_specs=pl.BlockSpec((1, tq, C), lambda b, ti, h: (b, ti, 0)),
            scratch_shapes=[pltpu.VMEM((tq, C), jnp.float32)]),
        compiler_params=pltpu.CompilerParams(
            dimension_semantics=("parallel", "parallel", "arbitrary"),
            vmem_limit_bytes=_VMEM_LIMIT),
    )(y_h, wp_h, bp2)

    return out


# ---------------------------------------------------------------------------
# Pure-JAX reference mirroring the PyTorch forward
# ---------------------------------------------------------------------------
def self_attention_ref(x, w_qkv, b_qkv, w_proj, b_proj, n_head):
    B, T, C = x.shape
    D = C // n_head
    qkv = x @ w_qkv + b_qkv
    q, k, v = jnp.split(qkv, 3, axis=-1)

    def heads(a):
        return a.reshape(B, T, n_head, D).transpose(0, 2, 1, 3)

    q, k, v = heads(q), heads(k), heads(v)
    scores = jnp.einsum('bhtd,bhsd->bhts', q, k) / jnp.sqrt(D)
    mask = jnp.tril(jnp.ones((T, T), dtype=bool))
    scores = jnp.where(mask, scores, -jnp.inf)
    attn = jax.nn.softmax(scores, axis=-1)
    y = jnp.einsum('bhts,bhsd->bhtd', attn, v)
    y = y.transpose(0, 2, 1, 3).reshape(B, T, C)
    return y @ w_proj + b_proj


if __name__ == "__main__":
    # config: n_embd=32, n_head=4 -> head_dim=8 ; batch=2, seq=8
    B, T, C, n_head = 2, 8, 32, 4

    key = jax.random.PRNGKey(0)
    kx, k1, k2, k3, k4 = jax.random.split(key, 5)

    x = jax.random.normal(kx, (B, T, C), dtype=jnp.float32)
    w_qkv = jax.random.normal(k1, (C, 3 * C), dtype=jnp.float32) * 0.02
    b_qkv = jax.random.normal(k2, (3 * C,), dtype=jnp.float32) * 0.02
    w_proj = jax.random.normal(k3, (C, C), dtype=jnp.float32) * 0.02
    b_proj = jax.random.normal(k4, (C,), dtype=jnp.float32) * 0.02

    out = self_attention_pallas(x, w_qkv, b_qkv, w_proj, b_proj, n_head)
    out = jax.block_until_ready(out)

    ref = self_attention_ref(x, w_qkv, b_qkv, w_proj, b_proj, n_head)
    assert out.shape == (B, T, C)
    max_err = float(jnp.max(jnp.abs(out - ref)))
    # bf16 operands with f32 accumulation -> bf16-level tolerance vs f32 ref.
    assert jnp.allclose(out, ref, atol=2e-2, rtol=2e-2), \
        f"mismatch vs reference (max abs err {max_err})"

    print("KERNEL_OK")
</pallas_src>

<mosaic_0001>
module attributes {stable_mosaic.version = 11 : i64} {
  func.func @_qkv_head_proj_kernel(%arg0: i32, %arg1: i32, %arg2: i32, %arg3: memref<1x8x32xbf16, #tpu.memory_space<vmem>>, %arg4: memref<1x32x8xbf16, #tpu.memory_space<vmem>>, %arg5: memref<1x32x8xbf16, #tpu.memory_space<vmem>>, %arg6: memref<1x32x8xbf16, #tpu.memory_space<vmem>>, %arg7: memref<1x1x8xf32, #tpu.memory_space<vmem>>, %arg8: memref<1x1x8xf32, #tpu.memory_space<vmem>>, %arg9: memref<1x1x8xf32, #tpu.memory_space<vmem>>, %arg10: memref<1x1x8x8xbf16, #tpu.memory_space<vmem>>, %arg11: memref<1x1x8x8xbf16, #tpu.memory_space<vmem>>, %arg12: memref<1x1x8x8xbf16, #tpu.memory_space<vmem>>) attributes {dimension_semantics = [#tpu.dimension_semantics<parallel>, #tpu.dimension_semantics<parallel>, #tpu.dimension_semantics<parallel>], iteration_bounds = array<i64: 2, 1, 4>, scalar_prefetch = 0 : i64, scratch_operands = 0 : i64, tpu.core_type = #tpu.core_type<tc>, window_params = [{transform_indices = @transform_0, window_bounds = array<i64: 1, 8, 32>}, {transform_indices = @transform_1, window_bounds = array<i64: 1, 32, 8>}, {transform_indices = @transform_2, window_bounds = array<i64: 1, 32, 8>}, {transform_indices = @transform_3, window_bounds = array<i64: 1, 32, 8>}, {transform_indices = @transform_4, window_bounds = array<i64: 1, 1, 8>}, {transform_indices = @transform_5, window_bounds = array<i64: 1, 1, 8>}, {transform_indices = @transform_6, window_bounds = array<i64: 1, 1, 8>}, {transform_indices = @transform_7, window_bounds = array<i64: 1, 1, 8, 8>}, {transform_indices = @transform_8, window_bounds = array<i64: 1, 1, 8, 8>}, {transform_indices = @transform_9, window_bounds = array<i64: 1, 1, 8, 8>}]} {
    %c0 = arith.constant 0 : index
    %c0_0 = arith.constant 0 : index
    %c0_1 = arith.constant 0 : index
    %0 = vector.load %arg3[%c0, %c0_0, %c0_1] : memref<1x8x32xbf16, #tpu.memory_space<vmem>>, vector<1x8x32xbf16>
    %1 = vector.shape_cast %0 : vector<1x8x32xbf16> to vector<8x32xbf16>
    %c0_2 = arith.constant 0 : index
    %c0_3 = arith.constant 0 : index
    %c0_4 = arith.constant 0 : index
    %2 = vector.load %arg4[%c0_2, %c0_3, %c0_4] : memref<1x32x8xbf16, #tpu.memory_space<vmem>>, vector<1x32x8xbf16>
    %3 = vector.shape_cast %2 : vector<1x32x8xbf16> to vector<32x8xbf16>
    %cst = arith.constant dense<0.000000e+00> : vector<8x8xf32>
    %4 = tpu.matmul %1, %3, %cst {dimension_numbers = #tpu.dot_dimension_numbers<[1], [0], [0], [1], [0, 0, 1, 1], [], []>} : vector<8x32xbf16>, vector<32x8xbf16>, vector<8x8xf32> -> vector<8x8xf32>
    %c0_5 = arith.constant 0 : index
    %c0_6 = arith.constant 0 : index
    %c0_7 = arith.constant 0 : index
    %5 = vector.load %arg7[%c0_5, %c0_6, %c0_7] : memref<1x1x8xf32, #tpu.memory_space<vmem>>, vector<1x1x8xf32>
    %6 = vector.shape_cast %5 : vector<1x1x8xf32> to vector<1x8xf32>
    %7 = vector.broadcast %6 : vector<1x8xf32> to vector<8x8xf32>
    %8 = arith.addf %4, %7 : vector<8x8xf32>
    %cst_8 = arith.constant 0.353553385 : f32
    %9 = vector.broadcast %cst_8 : f32 to vector<8x8xf32>
    %10 = arith.mulf %8, %9 : vector<8x8xf32>
    %c0_9 = arith.constant 0 : index
    %c0_10 = arith.constant 0 : index
    %c0_11 = arith.constant 0 : index
    %11 = vector.load %arg5[%c0_9, %c0_10, %c0_11] : memref<1x32x8xbf16, #tpu.memory_space<vmem>>, vector<1x32x8xbf16>
    %12 = vector.shape_cast %11 : vector<1x32x8xbf16> to vector<32x8xbf16>
    %cst_12 = arith.constant dense<0.000000e+00> : vector<8x8xf32>
    %13 = tpu.matmul %1, %12, %cst_12 {dimension_numbers = #tpu.dot_dimension_numbers<[1], [0], [0], [1], [0, 0, 1, 1], [], []>} : vector<8x32xbf16>, vector<32x8xbf16>, vector<8x8xf32> -> vector<8x8xf32>
    %c0_13 = arith.constant 0 : index
    %c0_14 = arith.constant 0 : index
    %c0_15 = arith.constant 0 : index
    %14 = vector.load %arg8[%c0_13, %c0_14, %c0_15] : memref<1x1x8xf32, #tpu.memory_space<vmem>>, vector<1x1x8xf32>
    %15 = vector.shape_cast %14 : vector<1x1x8xf32> to vector<1x8xf32>
    %16 = vector.broadcast %15 : vector<1x8xf32> to vector<8x8xf32>
    %17 = arith.addf %13, %16 : vector<8x8xf32>
    %c0_16 = arith.constant 0 : index
    %c0_17 = arith.constant 0 : index
    %c0_18 = arith.constant 0 : index
    %18 = vector.load %arg6[%c0_16, %c0_17, %c0_18] : memref<1x32x8xbf16, #tpu.memory_space<vmem>>, vector<1x32x8xbf16>
    %19 = vector.shape_cast %18 : vector<1x32x8xbf16> to vector<32x8xbf16>
    %cst_19 = arith.constant dense<0.000000e+00> : vector<8x8xf32>
    %20 = tpu.matmul %1, %19, %cst_19 {dimension_numbers = #tpu.dot_dimension_numbers<[1], [0], [0], [1], [0, 0, 1, 1], [], []>} : vector<8x32xbf16>, vector<32x8xbf16>, vector<8x8xf32> -> vector<8x8xf32>
    %c0_20 = arith.constant 0 : index
    %c0_21 = arith.constant 0 : index
    %c0_22 = arith.constant 0 : index
    %21 = vector.load %arg9[%c0_20, %c0_21, %c0_22] : memref<1x1x8xf32, #tpu.memory_space<vmem>>, vector<1x1x8xf32>
    %22 = vector.shape_cast %21 : vector<1x1x8xf32> to vector<1x8xf32>
    %23 = vector.broadcast %22 : vector<1x8xf32> to vector<8x8xf32>
    %24 = arith.addf %20, %23 : vector<8x8xf32>
    %25 = arith.truncf %10 : vector<8x8xf32> to vector<8x8xbf16>
    %c0_23 = arith.constant 0 : index
    %c0_24 = arith.constant 0 : index
    %c0_25 = arith.constant 0 : index
    %c0_26 = arith.constant 0 : index
    %26 = vector.load %arg10[%c0_23, %c0_24, %c0_25, %c0_26] : memref<1x1x8x8xbf16, #tpu.memory_space<vmem>>, vector<1x1x8x8xbf16>
    %27 = vector.shape_cast %26 : vector<1x1x8x8xbf16> to vector<8x8xbf16>
    %28 = vector.shape_cast %25 : vector<8x8xbf16> to vector<1x1x8x8xbf16>
    tpu.vector_store %arg10[%c0_23, %c0_24, %c0_25, %c0_26], %28 {strides = array<i32>} : memref<1x1x8x8xbf16, #tpu.memory_space<vmem>>, vector<1x1x8x8xbf16>,
    %29 = arith.truncf %17 : vector<8x8xf32> to vector<8x8xbf16>
    %c0_27 = arith.constant 0 : index
    %c0_28 = arith.constant 0 : index
    %c0_29 = arith.constant 0 : index
    %c0_30 = arith.constant 0 : index
    %30 = vector.load %arg11[%c0_27, %c0_28, %c0_29, %c0_30] : memref<1x1x8x8xbf16, #tpu.memory_space<vmem>>, vector<1x1x8x8xbf16>
    %31 = vector.shape_cast %30 : vector<1x1x8x8xbf16> to vector<8x8xbf16>
    %32 = vector.shape_cast %29 : vector<8x8xbf16> to vector<1x1x8x8xbf16>
    tpu.vector_store %arg11[%c0_27, %c0_28, %c0_29, %c0_30], %32 {strides = array<i32>} : memref<1x1x8x8xbf16, #tpu.memory_space<vmem>>, vector<1x1x8x8xbf16>,
    %33 = arith.truncf %24 : vector<8x8xf32> to vector<8x8xbf16>
    %c0_31 = arith.constant 0 : index
    %c0_32 = arith.constant 0 : index
    %c0_33 = arith.constant 0 : index
    %c0_34 = arith.constant 0 : index
    %34 = vector.load %arg12[%c0_31, %c0_32, %c0_33, %c0_34] : memref<1x1x8x8xbf16, #tpu.memory_space<vmem>>, vector<1x1x8x8xbf16>
    %35 = vector.shape_cast %34 : vector<1x1x8x8xbf16> to vector<8x8xbf16>
    %36 = vector.shape_cast %33 : vector<8x8xbf16> to vector<1x1x8x8xbf16>
    tpu.vector_store %arg12[%c0_31, %c0_32, %c0_33, %c0_34], %36 {strides = array<i32>} : memref<1x1x8x8xbf16, #tpu.memory_space<vmem>>, vector<1x1x8x8xbf16>,
    return
  }
  func.func @transform_0(%arg0: i32, %arg1: i32, %arg2: i32) -> (i32, i32, i32) {
    %c0_i32 = arith.constant 0 : i32
    %c0_i32_0 = arith.constant 0 : i32
    return %arg0, %arg1, %c0_i32 : i32, i32, i32
  }
  func.func @transform_1(%arg0: i32, %arg1: i32, %arg2: i32) -> (i32, i32, i32) {
    %c0_i32 = arith.constant 0 : i32
    %c0_i32_0 = arith.constant 0 : i32
    %c0_i32_1 = arith.constant 0 : i32
    return %arg2, %c0_i32, %c0_i32_0 : i32, i32, i32
  }
  func.func @transform_2(%arg0: i32, %arg1: i32, %arg2: i32) -> (i32, i32, i32) {
    %c0_i32 = arith.constant 0 : i32
    %c0_i32_0 = arith.constant 0 : i32
    %c0_i32_1 = arith.constant 0 : i32
    return %arg2, %c0_i32, %c0_i32_0 : i32, i32, i32
  }
  func.func @transform_3(%arg0: i32, %arg1: i32, %arg2: i32) -> (i32, i32, i32) {
    %c0_i32 = arith.constant 0 : i32
    %c0_i32_0 = arith.constant 0 : i32
    %c0_i32_1 = arith.constant 0 : i32
    return %arg2, %c0_i32, %c0_i32_0 : i32, i32, i32
  }
  func.func @transform_4(%arg0: i32, %arg1: i32, %arg2: i32) -> (i32, i32, i32) {
    %c0_i32 = arith.constant 0 : i32
    %c0_i32_0 = arith.constant 0 : i32
    %c0_i32_1 = arith.constant 0 : i32
    return %arg2, %c0_i32, %c0_i32_0 : i32, i32, i32
  }
  func.func @transform_5(%arg0: i32, %arg1: i32, %arg2: i32) -> (i32, i32, i32) {
    %c0_i32 = arith.constant 0 : i32
    %c0_i32_0 = arith.constant 0 : i32
    %c0_i32_1 = arith.constant 0 : i32
    return %arg2, %c0_i32, %c0_i32_0 : i32, i32, i32
  }
  func.func @transform_6(%arg0: i32, %arg1: i32, %arg2: i32) -> (i32, i32, i32) {
    %c0_i32 = arith.constant 0 : i32
    %c0_i32_0 = arith.constant 0 : i32
    %c0_i32_1 = arith.constant 0 : i32
    return %arg2, %c0_i32, %c0_i32_0 : i32, i32, i32
  }
  func.func @transform_7(%arg0: i32, %arg1: i32, %arg2: i32) -> (i32, i32, i32, i32) {
    %c0_i32 = arith.constant 0 : i32
    %c0_i32_0 = arith.constant 0 : i32
    return %arg0, %arg2, %arg1, %c0_i32 : i32, i32, i32, i32
  }
  func.func @transform_8(%arg0: i32, %arg1: i32, %arg2: i32) -> (i32, i32, i32, i32) {
    %c0_i32 = arith.constant 0 : i32
    %c0_i32_0 = arith.constant 0 : i32
    return %arg0, %arg2, %arg1, %c0_i32 : i32, i32, i32, i32
  }
  func.func @transform_9(%arg0: i32, %arg1: i32, %arg2: i32) -> (i32, i32, i32, i32) {
    %c0_i32 = arith.constant 0 : i32
    %c0_i32_0 = arith.constant 0 : i32
    return %arg0, %arg2, %arg1, %c0_i32 : i32, i32, i32, i32
  }
}

</mosaic_0001>

<llo_original>
// kernel: tpu_custom_call.1
$region0: #{tpu_custom_call.1}
  #allocation0 [shape = 'u32[]', space=smem, size = 0x4, offset = 0x4, fixed_abs, tag = 'smem constant byte address 0x4 - core index']
  #allocation1 [shape = 'u32[144,128]{1,0:T(1,128)}', space=vmem, size = 0x12000, scoped, tag = 'internal scratch']
  %s0 = inlined_call_operand.vmem [shape: bf16[2,8,32], index: 0, kind: input, shape index: {}]
  %s1 = inlined_call_operand.vmem [shape: bf16[4,32,8], index: 1, kind: input, shape index: {}]
  %s2 = inlined_call_operand.vmem [shape: bf16[4,32,8], index: 2, kind: input, shape index: {}]
  %s3 = inlined_call_operand.vmem [shape: bf16[4,32,8], index: 3, kind: input, shape index: {}]
  %s4 = inlined_call_operand.vmem [shape: f32[4,1,8], index: 4, kind: input, shape index: {}]
  %s5 = inlined_call_operand.vmem [shape: f32[4,1,8], index: 5, kind: input, shape index: {}]
  %s6 = inlined_call_operand.vmem [shape: f32[4,1,8], index: 6, kind: input, shape index: {}]
  %s7 = inlined_call_operand.hbm [shape: bf16[2,4,8,8], index: 7, kind: output, shape index: {0}]
  %s8 = inlined_call_operand.hbm [shape: bf16[2,4,8,8], index: 8, kind: output, shape index: {1}]
  %s9 = inlined_call_operand.hbm [shape: bf16[2,4,8,8], index: 9, kind: output, shape index: {2}]
  %10 = xla_tuple %s7, %s8, %s9
  %s11 = sld [smem:[#allocation0]]
  $region77: #{tpu_custom_call.1} parent=0
    _
  %s13 = ssub.s32 1, %s11
  %s14 = scalar_select 0, %s13, %s11
  $region1: #{tpu_custom_call.1} parent=0
    #allocation2 [shape = 'u8[4096]{0}', space=vmem, size = 0x1000, scoped, tag = 'output window, operand 0']
    #allocation3 [shape = 's32[2]{0}', space=sflag, size = 0x8, scoped, tag = 'scoped memory for tpu_custom_call.1']
    #allocation4 [shape = 'u8[4096]{0}', space=vmem, size = 0x1000, scoped, tag = 'output window, operand 1']
    #allocation5 [shape = 's32[2]{0}', space=sflag, size = 0x8, scoped, tag = 'scoped memory for tpu_custom_call.1']
    #allocation6 [shape = 'u8[4096]{0}', space=vmem, size = 0x1000, scoped, tag = 'output window, operand 2']
    %15 = vsyncpa [#allocation3], 0
    %s16 = scalar_lea.sflag [#allocation3], 1
    %17 = vsyncpa %s16, 0
    %18 = vsyncpa [#allocation5], 0
    %s19 = scalar_lea.sflag [#allocation5], 1
    %20 = vsyncpa %s19, 0
    loop: start=0, step=1, limit=10
    $region2: #{tpu_custom_call.1} parent=1 // loop_pre_header
      _
    $region3: #{tpu_custom_call.1} parent=1 // loop_header
      %s22 = sphi 0, %s26
      %p23 = scmp.ge.s32.totalorder %s22, 10
      %s29 = sphi 0, %s48
      %s30 = sphi 0, %s44
      %s31 = sphi 0, %s40
      %s32 = sphi 0, %s29
      %s33 = sphi 0, %s30
      %s34 = sphi 0, %s31
      %s35 = sphi 0, %s32
      %s36 = sphi 0, %s33
      %s37 = sphi 0, %s34
      %s53 = sphi 0, %s55
      %s56 = sphi 0, %s53
      %s57 = sphi 0, %s56
      %s73 = sphi 0, %s57
      %s79 = sphi 0, %s81
      %s82 = sphi 0, %s79
      %s83 = sphi 0, %s82
      %s99 = sphi 0, %s83
      %s105 = sphi 0, %s107
      %s108 = sphi 0, %s105
      %s109 = sphi 0, %s108
      %s125 = sphi 0, %s109
      %s131 = sphi 0, %s133
      %s134 = sphi 0, %s131
      %s135 = sphi 0, %s134
      %s151 = sphi 0, %s135
      %s157 = sphi 0, %s159
      %s160 = sphi 0, %s157
      %s161 = sphi 0, %s160
      %s177 = sphi 0, %s161
      %s183 = sphi 0, %s185
      %s186 = sphi 0, %s183
      %s187 = sphi 0, %s186
      %s203 = sphi 0, %s187
      %s209 = sphi 0, %s211
      %s212 = sphi 0, %s209
      %s213 = sphi 0, %s212
      %s229 = sphi 0, %s213
      %s239 = sphi 0, %s241
      %s242 = sphi 0, %s239
      %s243 = sphi 0, %s242
      %s259 = sphi 0, %s243
      %s269 = sphi 0, %s271
      %s272 = sphi 0, %s269
      %s273 = sphi 0, %s272
      %s289 = sphi 0, %s273
      %s299 = sphi 0, %s301
      %s302 = sphi 0, %s299
      %s303 = sphi 0, %s302
      %s319 = sphi 0, %s303
    $region4: #{tpu_custom_call.1} parent=1 // loop_header_branch
      %25 = sbr.rel (%p23) target = $region8
    $region5: #{tpu_custom_call.1} parent=1 // loop_body
      %s27 = ssub.s32 %s22, 1
      %s28 = ssub.s32 %s22, 2
      %s38 = sadd.s32 1, %s31
      %p39 = scmp.ge.s32.totalorder %s38, 4
      %s40 = scalar_select %p39, 0, %s38
      %s41 = sadd.s32 1, %s30
      %s42 = scalar_select %p39, %s41, %s30
      %p43 = scmp.ge.s32.totalorder %s42, 1
      %s44 = scalar_select %p43, 0, %s42
      %s45 = sadd.s32 1, %s29
      %s46 = scalar_select %p43, %s45, %s29
      %p47 = scmp.ge.s32.totalorder %s46, 2
      %s48 = scalar_select %p47, 0, %s46
      %s49 = ssub.s32 %s29, %s48
      %s50 = ssub.s32 %s30, %s44
      %s51 = sor.u32 %s49, %s50
      %p52 = scmp.eq.s32.totalorder %s51, 0
      %s54 = sadd.s32 %s53, 1
      %s55 = scalar_select %p52, %s53, %s54
      %p58 = pneg %p52
      %p59 = scmp.eq.s32.totalorder %s22, 7
      %p60 = por %p58, %p59
      %p61 = scmp.ne.s32.totalorder %s53, %s56
      %p62 = scmp.eq.s32.totalorder %s22, 0
      %p63 = por %p61, %p62
      %p64 = scmp.ne.s32.totalorder %s53, %s56
      %p65 = scmp.eq.s32.totalorder %s27, 7
      %p66 = por %p64, %p65
      %p67 = scmp.ne.s32.totalorder %s56, %s57
      %p68 = scmp.eq.s32.totalorder %s27, 0
      %p69 = por %p67, %p68
      %p70 = scmp.ne.s32.totalorder %s56, %s57
      %p71 = scmp.eq.s32.totalorder %s28, 7
      %p72 = por %p70, %p71
      %p74 = scmp.ne.s32.totalorder %s57, %s73
      %p75 = scmp.eq.s32.totalorder %s28, 0
      %p76 = por %p74, %p75
      %s77 = ssub.s32 %s31, %s40
      %p78 = scmp.eq.s32.totalorder %s77, 0
      %s80 = sadd.s32 %s79, 1
      %s81 = scalar_select %p78, %s79, %s80
      %p84 = pneg %p78
      %p85 = scmp.eq.s32.totalorder %s22, 7
      %p86 = por %p84, %p85
      %p87 = scmp.ne.s32.totalorder %s79, %s82
      %p88 = scmp.eq.s32.totalorder %s22, 0
      %p89 = por %p87, %p88
      %p90 = scmp.ne.s32.totalorder %s79, %s82
      %p91 = scmp.eq.s32.totalorder %s27, 7
      %p92 = por %p90, %p91
      %p93 = scmp.ne.s32.totalorder %s82, %s83
      %p94 = scmp.eq.s32.totalorder %s27, 0
      %p95 = por %p93, %p94
      %p96 = scmp.ne.s32.totalorder %s82, %s83
      %p97 = scmp.eq.s32.totalorder %s28, 7
      %p98 = por %p96, %p97
      %p100 = scmp.ne.s32.totalorder %s83, %s99
      %p101 = scmp.eq.s32.totalorder %s28, 0
      %p102 = por %p100, %p101
      %s103 = ssub.s32 %s31, %s40
      %p104 = scmp.eq.s32.totalorder %s103, 0
      %s106 = sadd.s32 %s105, 1
      %s107 = scalar_select %p104, %s105, %s106
      %p110 = pneg %p104
      %p111 = scmp.eq.s32.totalorder %s22, 7
      %p112 = por %p110, %p111
      %p113 = scmp.ne.s32.totalorder %s105, %s108
      %p114 = scmp.eq.s32.totalorder %s22, 0
      %p115 = por %p113, %p114
      %p116 = scmp.ne.s32.totalorder %s105, %s108
      %p117 = scmp.eq.s32.totalorder %s27, 7
      %p118 = por %p116, %p117
      %p119 = scmp.ne.s32.totalorder %s108, %s109
      %p120 = scmp.eq.s32.totalorder %s27, 0
      %p121 = por %p119, %p120
      %p122 = scmp.ne.s32.totalorder %s108, %s109
      %p123 = scmp.eq.s32.totalorder %s28, 7
      %p124 = por %p122, %p123
      %p126 = scmp.ne.s32.totalorder %s109, %s125
      %p127 = scmp.eq.s32.totalorder %s28, 0
      %p128 = por %p126, %p127
      %s129 = ssub.s32 %s31, %s40
      %p130 = scmp.eq.s32.totalorder %s129, 0
      %s132 = sadd.s32 %s131, 1
      %s133 = scalar_select %p130, %s131, %s132
      %p136 = pneg %p130
      %p137 = scmp.eq.s32.totalorder %s22, 7
      %p138 = por %p136, %p137
      %p139 = scmp.ne.s32.totalorder %s131, %s134
      %p140 = scmp.eq.s32.totalorder %s22, 0
      %p141 = por %p139, %p140
      %p142 = scmp.ne.s32.totalorder %s131, %s134
      %p143 = scmp.eq.s32.totalorder %s27, 7
      %p144 = por %p142, %p143
      %p145 = scmp.ne.s32.totalorder %s134, %s135
      %p146 = scmp.eq.s32.totalorder %s27, 0
      %p147 = por %p145, %p146
      %p148 = scmp.ne.s32.totalorder %s134, %s135
      %p149 = scmp.eq.s32.totalorder %s28, 7
      %p150 = por %p148, %p149
      %p152 = scmp.ne.s32.totalorder %s135, %s151
      %p153 = scmp.eq.s32.totalorder %s28, 0
      %p154 = por %p152, %p153
      %s155 = ssub.s32 %s31, %s40
      %p156 = scmp.eq.s32.totalorder %s155, 0
      %s158 = sadd.s32 %s157, 1
      %s159 = scalar_select %p156, %s157, %s158
      %p162 = pneg %p156
      %p163 = scmp.eq.s32.totalorder %s22, 7
      %p164 = por %p162, %p163
      %p165 = scmp.ne.s32.totalorder %s157, %s160
      %p166 = scmp.eq.s32.totalorder %s22, 0
      %p167 = por %p165, %p166
      %p168 = scmp.ne.s32.totalorder %s157, %s160
      %p169 = scmp.eq.s32.totalorder %s27, 7
      %p170 = por %p168, %p169
      %p171 = scmp.ne.s32.totalorder %s160, %s161
      %p172 = scmp.eq.s32.totalorder %s27, 0
      %p173 = por %p171, %p172
      %p174 = scmp.ne.s32.totalorder %s160, %s161
      %p175 = scmp.eq.s32.totalorder %s28, 7
      %p176 = por %p174, %p175
      %p178 = scmp.ne.s32.totalorder %s161, %s177
      %p179 = scmp.eq.s32.totalorder %s28, 0
      %p180 = por %p178, %p179
      %s181 = ssub.s32 %s31, %s40
      %p182 = scmp.eq.s32.totalorder %s181, 0
      %s184 = sadd.s32 %s183, 1
      %s185 = scalar_select %p182, %s183, %s184
      %p188 = pneg %p182
      %p189 = scmp.eq.s32.totalorder %s22, 7
      %p190 = por %p188, %p189
      %p191 = scmp.ne.s32.totalorder %s183, %s186
      %p192 = scmp.eq.s32.totalorder %s22, 0
      %p193 = por %p191, %p192
      %p194 = scmp.ne.s32.totalorder %s183, %s186
      %p195 = scmp.eq.s32.totalorder %s27, 7
      %p196 = por %p194, %p195
      %p197 = scmp.ne.s32.totalorder %s186, %s187
      %p198 = scmp.eq.s32.totalorder %s27, 0
      %p199 = por %p197, %p198
      %p200 = scmp.ne.s32.totalorder %s186, %s187
      %p201 = scmp.eq.s32.totalorder %s28, 7
      %p202 = por %p200, %p201
      %p204 = scmp.ne.s32.totalorder %s187, %s203
      %p205 = scmp.eq.s32.totalorder %s28, 0
      %p206 = por %p204, %p205
      %s207 = ssub.s32 %s31, %s40
      %p208 = scmp.eq.s32.totalorder %s207, 0
      %s210 = sadd.s32 %s209, 1
      %s211 = scalar_select %p208, %s209, %s210
      %p214 = pneg %p208
      %p215 = scmp.eq.s32.totalorder %s22, 7
      %p216 = por %p214, %p215
      %p217 = scmp.ne.s32.totalorder %s209, %s212
      %p218 = scmp.eq.s32.totalorder %s22, 0
      %p219 = por %p217, %p218
      %p220 = scmp.ne.s32.totalorder %s209, %s212
      %p221 = scmp.eq.s32.totalorder %s27, 7
      %p222 = por %p220, %p221
      %p223 = scmp.ne.s32.totalorder %s212, %s213
      %p224 = scmp.eq.s32.totalorder %s27, 0
      %p225 = por %p223, %p224
      %p226 = scmp.ne.s32.totalorder %s212, %s213
      %p227 = scmp.eq.s32.totalorder %s28, 7
      %p228 = por %p226, %p227
      %p230 = scmp.ne.s32.totalorder %s213, %s229
      %p231 = scmp.eq.s32.totalorder %s28, 0
      %p232 = por %p230, %p231
      %s233 = ssub.s32 %s29, %s48
      %s234 = ssub.s32 %s31, %s40
      %s235 = sor.u32 %s233, %s234
      %s236 = ssub.s32 %s30, %s44
      %s237 = sor.u32 %s235, %s236
      %p238 = scmp.eq.s32.totalorder %s237, 0
      %s240 = sadd.s32 %s239, 1
      %s241 = scalar_select %p238, %s239, %s240
      %p244 = pneg %p238
      %p245 = scmp.eq.s32.totalorder %s22, 7
      %p246 = por %p244, %p245
      %p247 = scmp.ne.s32.totalorder %s239, %s242
      %p248 = scmp.eq.s32.totalorder %s22, 0
      %p249 = por %p247, %p248
      %p250 = scmp.ne.s32.totalorder %s239, %s242
      %p251 = scmp.eq.s32.totalorder %s27, 7
      %p252 = por %p250, %p251
      %p253 = scmp.ne.s32.totalorder %s242, %s243
      %p254 = scmp.eq.s32.totalorder %s27, 0
      %p255 = por %p253, %p254
      %p256 = scmp.ne.s32.totalorder %s242, %s243
      %p257 = scmp.eq.s32.totalorder %s28, 7
      %p258 = por %p256, %p257
      %p260 = scmp.ne.s32.totalorder %s243, %s259
      %p261 = scmp.eq.s32.totalorder %s28, 0
      %p262 = por %p260, %p261
      %s263 = ssub.s32 %s29, %s48
      %s264 = ssub.s32 %s31, %s40
      %s265 = sor.u32 %s263, %s264
      %s266 = ssub.s32 %s30, %s44
      %s267 = sor.u32 %s265, %s266
      %p268 = scmp.eq.s32.totalorder %s267, 0
      %s270 = sadd.s32 %s269, 1
      %s271 = scalar_select %p268, %s269, %s270
      %p274 = pneg %p268
      %p275 = scmp.eq.s32.totalorder %s22, 7
      %p276 = por %p274, %p275
      %p277 = scmp.ne.s32.totalorder %s269, %s272
      %p278 = scmp.eq.s32.totalorder %s22, 0
      %p279 = por %p277, %p278
      %p280 = scmp.ne.s32.totalorder %s269, %s272
      %p281 = scmp.eq.s32.totalorder %s27, 7
      %p282 = por %p280, %p281
      %p283 = scmp.ne.s32.totalorder %s272, %s273
      %p284 = scmp.eq.s32.totalorder %s27, 0
      %p285 = por %p283, %p284
      %p286 = scmp.ne.s32.totalorder %s272, %s273
      %p287 = scmp.eq.s32.totalorder %s28, 7
      %p288 = por %p286, %p287
      %p290 = scmp.ne.s32.totalorder %s273, %s289
      %p291 = scmp.eq.s32.totalorder %s28, 0
      %p292 = por %p290, %p291
      %s293 = ssub.s32 %s29, %s48
      %s294 = ssub.s32 %s31, %s40
      %s295 = sor.u32 %s293, %s294
      %s296 = ssub.s32 %s30, %s44
      %s297 = sor.u32 %s295, %s296
      %p298 = scmp.eq.s32.totalorder %s297, 0
      %s300 = sadd.s32 %s299, 1
      %s301 = scalar_select %p298, %s299, %s300
      %p304 = pneg %p298
      %p305 = scmp.eq.s32.totalorder %s22, 7
      %p306 = por %p304, %p305
      %p307 = scmp.ne.s32.totalorder %s299, %s302
      %p308 = scmp.eq.s32.totalorder %s22, 0
      %p309 = por %p307, %p308
      %p310 = scmp.ne.s32.totalorder %s299, %s302
      %p311 = scmp.eq.s32.totalorder %s27, 7
      %p312 = por %p310, %p311
      %p313 = scmp.ne.s32.totalorder %s302, %s303
      %p314 = scmp.eq.s32.totalorder %s27, 0
      %p315 = por %p313, %p314
      %p316 = scmp.ne.s32.totalorder %s302, %s303
      %p317 = scmp.eq.s32.totalorder %s28, 7
      %p318 = por %p316, %p317
      %p320 = scmp.ne.s32.totalorder %s303, %s319
      %p321 = scmp.eq.s32.totalorder %s28, 0
      %p322 = por %p320, %p321
      %p323 = scmp.le.s32.totalorder 1, %s22
      %p324 = scmp.lt.s32.totalorder %s22, 9
      %p325 = pnand %p323, %p324
      %p326 = pneg %p325
      // Predicated region
      $region9: #{tpu_custom_call.1} parent=5 // pred_check
        _
      $region10: #{tpu_custom_call.1} parent=5 // pred_check_branch
        %328 = sbr.rel (%p325) target = $region12
      $region11: #{tpu_custom_call.1} parent=5 // pred_region
        %s329 = ssub.s32 %s22, 1
      $region12: #{tpu_custom_call.1} parent=5 // pred_fallthru
        _
      %p330 = scmp.lt.s32.totalorder %s22, 8
      // Predicated region
      $region13: #{tpu_custom_call.1} parent=5 // pred_check
        %p331 = pneg %p330
      $region14: #{tpu_custom_call.1} parent=5 // pred_check_branch
        %333 = sbr.rel (%p331) target = $region16
      $region15: #{tpu_custom_call.1} parent=5 // pred_region
        // Predicated region
        $region17: #{tpu_custom_call.1} parent=15 // pred_check
          %p334 = pneg %p63
        $region18: #{tpu_custom_call.1} parent=15 // pred_check_branch
          %336 = sbr.rel (%p334) target = $region20
        $region19: #{tpu_custom_call.1} parent=15 // pred_region
          %p337 = scmp.lt.s32.totalorder %s29, 1
          %s338 = scalar_select %p337, %s29, 1
          %p339 = scmp.lt.s32.totalorder %s30, 0
          %s340 = scalar_select %p339, %s30, 0
          %s341 = sadd.s32 %s340, %s338
          %s342 = smul.addr %s341, 4
          %s343 = scalar_lea.vmem %s0, %s342
        $region20: #{tpu_custom_call.1} parent=15 // pred_fallthru
          _
        // Predicated region
        $region21: #{tpu_custom_call.1} parent=15 // pred_check
          %p344 = pneg %p89
        $region22: #{tpu_custom_call.1} parent=15 // pred_check_branch
          %346 = sbr.rel (%p344) target = $region24
        $region23: #{tpu_custom_call.1} parent=15 // pred_region
          %p347 = scmp.lt.s32.totalorder %s31, 3
          %s348 = scalar_select %p347, %s31, 3
          %s349 = smul.addr %s348, 4
          %s350 = smul.addr %s349, 4
          %s351 = scalar_lea.vmem %s1, %s350
        $region24: #{tpu_custom_call.1} parent=15 // pred_fallthru
          _
        // Predicated region
        $region25: #{tpu_custom_call.1} parent=15 // pred_check
          %p352 = pneg %p115
        $region26: #{tpu_custom_call.1} parent=15 // pred_check_branch
          %354 = sbr.rel (%p352) target = $region28
        $region27: #{tpu_custom_call.1} parent=15 // pred_region
          %p355 = scmp.lt.s32.totalorder %s31, 3
          %s356 = scalar_select %p355, %s31, 3
          %s357 = smul.addr %s356, 4
          %s358 = smul.addr %s357, 4
          %s359 = scalar_lea.vmem %s2, %s358
        $region28: #{tpu_custom_call.1} parent=15 // pred_fallthru
          _
        // Predicated region
        $region29: #{tpu_custom_call.1} parent=15 // pred_check
          %p360 = pneg %p141
        $region30: #{tpu_custom_call.1} parent=15 // pred_check_branch
          %362 = sbr.rel (%p360) target = $region32
        $region31: #{tpu_custom_call.1} parent=15 // pred_region
          %p363 = scmp.lt.s32.totalorder %s31, 3
          %s364 = scalar_select %p363, %s31, 3
          %s365 = smul.addr %s364, 4
          %s366 = smul.addr %s365, 4
          %s367 = scalar_lea.vmem %s3, %s366
        $region32: #{tpu_custom_call.1} parent=15 // pred_fallthru
          _
        // Predicated region
        $region33: #{tpu_custom_call.1} parent=15 // pred_check
          %p368 = pneg %p167
        $region34: #{tpu_custom_call.1} parent=15 // pred_check_branch
          %370 = sbr.rel (%p368) target = $region36
        $region35: #{tpu_custom_call.1} parent=15 // pred_region
          %p371 = scmp.lt.s32.totalorder %s31, 3
          %s372 = scalar_select %p371, %s31, 3
          %s373 = scalar_lea.vmem %s4, %s372
        $region36: #{tpu_custom_call.1} parent=15 // pred_fallthru
          _
        // Predicated region
        $region37: #{tpu_custom_call.1} parent=15 // pred_check
          %p374 = pneg %p193
        $region38: #{tpu_custom_call.1} parent=15 // pred_check_branch
          %376 = sbr.rel (%p374) target = $region40
        $region39: #{tpu_custom_call.1} parent=15 // pred_region
          %p377 = scmp.lt.s32.totalorder %s31, 3
          %s378 = scalar_select %p377, %s31, 3
          %s379 = scalar_lea.vmem %s5, %s378
        $region40: #{tpu_custom_call.1} parent=15 // pred_fallthru
          _
        // Predicated region
        $region41: #{tpu_custom_call.1} parent=15 // pred_check
          %p380 = pneg %p219
        $region42: #{tpu_custom_call.1} parent=15 // pred_check_branch
          %382 = sbr.rel (%p380) target = $region44
        $region43: #{tpu_custom_call.1} parent=15 // pred_region
          %p383 = scmp.lt.s32.totalorder %s31, 3
          %s384 = scalar_select %p383, %s31, 3
          %s385 = scalar_lea.vmem %s6, %s384
        $region44: #{tpu_custom_call.1} parent=15 // pred_fallthru
          _
      $region16: #{tpu_custom_call.1} parent=5 // pred_fallthru
        _
      %p386 = scmp.le.s32.totalorder 1, %s22
      %p387 = scmp.lt.s32.totalorder %s22, 9
      %p388 = pnand %p386, %p387
      %p389 = pneg %p388
      // Predicated region
      $region45: #{tpu_custom_call.1} parent=5 // pred_check
        _
      $region46: #{tpu_custom_call.1} parent=5 // pred_check_branch
        %391 = sbr.rel (%p388) target = $region48
      $region47: #{tpu_custom_call.1} parent=5 // pred_region
        %s392 = ssub.s32 %s22, 1
        %p393 = scmp.lt.s32.totalorder %s32, 1
        %s394 = scalar_select %p393, %s32, 1
        %p395 = scmp.lt.s32.totalorder %s33, 0
        %s396 = scalar_select %p395, %s33, 0
        %s397 = sadd.s32 %s396, %s394
        %s398 = smul.addr %s397, 4
        %s399 = scalar_lea.vmem %s0, %s398
        %p400 = pneg %p69
        %p401 = pneg %p66
        %p402 = scmp.lt.s32.totalorder %s34, 3
        %s403 = scalar_select %p402, %s34, 3
        %s404 = smul.addr %s403, 4
        %s405 = smul.addr %s404, 4
        %s406 = scalar_lea.vmem %s1, %s405
        %p407 = pneg %p95
        %p408 = pneg %p92
        %p409 = scmp.lt.s32.totalorder %s34, 3
        %s410 = scalar_select %p409, %s34, 3
        %s411 = smul.addr %s410, 4
        %s412 = smul.addr %s411, 4
        %s413 = scalar_lea.vmem %s2, %s412
        %p414 = pneg %p121
        %p415 = pneg %p118
        %p416 = scmp.lt.s32.totalorder %s34, 3
        %s417 = scalar_select %p416, %s34, 3
        %s418 = smul.addr %s417, 4
        %s419 = smul.addr %s418, 4
        %s420 = scalar_lea.vmem %s3, %s419
        %p421 = pneg %p147
        %p422 = pneg %p144
        %p423 = scmp.lt.s32.totalorder %s34, 3
        %s424 = scalar_select %p423, %s34, 3
        %s425 = scalar_lea.vmem %s4, %s424
        %p426 = pneg %p173
        %p427 = pneg %p170
        %p428 = scmp.lt.s32.totalorder %s34, 3
        %s429 = scalar_select %p428, %s34, 3
        %s430 = scalar_lea.vmem %s5, %s429
        %p431 = pneg %p199
        %p432 = pneg %p196
        %p433 = scmp.lt.s32.totalorder %s34, 3
        %s434 = scalar_select %p433, %s34, 3
        %s435 = scalar_lea.vmem %s6, %s434
        %p436 = pneg %p225
        %p437 = pneg %p222
        %p438 = pneg %p255
        %p439 = pneg %p252
        %s440 = sand.u32 %s242, 1
        %s441 = scalar_lea.sflag [#allocation3], %s440
        %s442 = sand.u32 %s242, 1
        %s443 = smul.addr %s442, 4
        %s444 = scalar_lea.vmem [#allocation2], %s443
        %p445 = pneg %p285
        %p446 = pneg %p282
        %s447 = sand.u32 %s27, 1
        %s448 = scalar_lea.sflag [#allocation5], %s447
        %s449 = sand.u32 %s272, 1
        %s450 = smul.addr %s449, 4
        %s451 = scalar_lea.vmem [#allocation4], %s450
        %p452 = pneg %p315
        %p453 = pneg %p312
        %s454 = sand.u32 %s27, 1
        %s455 = scalar_lea.sflag [#allocation5], %s454
        %s456 = sand.u32 %s302, 1
        %s457 = smul.addr %s456, 4
        %s458 = scalar_lea.vmem [#allocation6], %s457
        %p459 = scmp.lt.s32.totalorder %s32, 1
        %s460 = scalar_select %p459, %s32, 1
        %p461 = scmp.lt.s32.totalorder %s33, 0
        %s462 = scalar_select %p461, %s33, 0
        %s463 = sadd.s32 %s462, %s460
        %s464 = smul.addr %s463, 4
        %s465 = scalar_lea.vmem %s0, %s464
        %p466 = scmp.lt.s32.totalorder %s34, 3
        %s467 = scalar_select %p466, %s34, 3
        %s468 = smul.addr %s467, 4
        %s469 = smul.addr %s468, 4
        %s470 = scalar_lea.vmem %s1, %s469
        %p471 = scmp.lt.s32.totalorder %s34, 3
        %s472 = scalar_select %p471, %s34, 3
        %s473 = smul.addr %s472, 4
        %s474 = smul.addr %s473, 4
        %s475 = scalar_lea.vmem %s2, %s474
        %p476 = scmp.lt.s32.totalorder %s34, 3
        %s477 = scalar_select %p476, %s34, 3
        %s478 = smul.addr %s477, 4
        %s479 = smul.addr %s478, 4
        %s480 = scalar_lea.vmem %s3, %s479
        %p481 = scmp.lt.s32.totalorder %s34, 3
        %s482 = scalar_select %p481, %s34, 3
        %s483 = scalar_lea.vmem %s4, %s482
        %p484 = scmp.lt.s32.totalorder %s34, 3
        %s485 = scalar_select %p484, %s34, 3
        %s486 = scalar_lea.vmem %s5, %s485
        %p487 = scmp.lt.s32.totalorder %s34, 3
        %s488 = scalar_select %p487, %s34, 3
        %s489 = scalar_lea.vmem %s6, %s488
        %v491 = vld [vmem:[%s465] sm:$0xf]
        %v492 = vld [vmem:[%s470] sm:$0xf]
        %v493 = vld [vmem:[%s470 + $0x4] sm:$0xf]
        %v494 = vld [vmem:[%s470 + $0x8] sm:$0xf]
        %v495 = vld [vmem:[%s470 + $0xc] sm:$0xf]
        %v496 = vld [vmem:[%s483] sm:$0x1]
        %v498 = vlaneseq
        %v499 = vshrl.u32 %v498, 7
        %v500 = vsub.s32 0, %v499
        %v501 = vrot.slane %v496, %v500
        %v507 = vunpack.c.l.b16 %v492
        %v508 = vunpack.c.l.b16 %v493
        %v509 = vunpack.c.l.b16 %v494
        %v510 = vunpack.c.l.b16 %v495
        %v511 = vpack.c.b16 %v508, %v507
        %v512 = vpack.c.b16 %v510, %v509
        %vm515 = vcmask 261120
        %v517 = vsel %vm515, %v491, 0
        %519 = vmatprep.subr.bf16.mxu0 0
        %520 = vmatpush1.bf16.msra.mxu0 0
        %521 = vmatprep.subr.bf16.mxu0 0
        %522 = vmatpush1.bf16.msra.mxu0 0
        %523 = vmatprep.subr.bf16.mxu0 0
        %524 = vmatpush1.bf16.msra.mxu0 0
        %525 = vmatprep.subr.bf16.mxu0 0
        %526 = vmatpush1.bf16.msra.mxu0 0
        %527 = vmatprep.subr.bf16.mxu0 0
        %528 = vmatpush1.bf16.msra.mxu0 0
        %529 = vmatprep.subr.bf16.mxu0 0
        %530 = vmatpush1.bf16.msra.mxu0 0
        %531 = vmatprep.subr.bf16.mxu0 0
        %532 = vmatpush1.bf16.msra.mxu0 %v512
        %533 = vmatprep.subr.bf16.mxu0 0
        %534 = vmatpush1.bf16.msra.mxu0 %v511
        %535 = vmatprep.subr.bf16.mxu0 0
        %536 = vmatpush2.bf16.msra.mxu0 0
        %537 = vmatprep.subr.bf16.mxu0 0
        %538 = vmatpush2.bf16.msra.mxu0 0
        %539 = vmatprep.subr.bf16.mxu0 0
        %540 = vmatpush2.bf16.msra.mxu0 0
        %541 = vmatprep.subr.bf16.mxu0 0
        %542 = vmatpush2.bf16.msra.mxu0 0
        %543 = vmatprep.subr.bf16.mxu0 0
        %544 = vmatpush2.bf16.msra.mxu0 0
        %545 = vmatprep.subr.bf16.mxu0 0
        %546 = vmatpush2.bf16.msra.mxu0 0
        %547 = vmatprep.subr.bf16.mxu0 0
        %548 = vmatpush2.bf16.msra.mxu0 0
        %549 = vmatprep.subr.bf16.mxu0 0
        %550 = vmatpush2.bf16.msra.mxu0 0
        %551 = vmatprep.mubr.bf16.mxu0 0
        %552 = vmatmul.mubr.bf16.gmra.mxu0 %v517
        %v553 = vpop.f32.mrf.mxu0
        %v554 = vadd.f32 %v501, %v553
        %v555 = vpop.f32.mrf.mxu0
        %v556 = vpop.f32.mrf.mxu0
        %v557 = vpop.f32.mrf.mxu0
        %558 = vdwg.mxu0
        %v559 = vmul.f32 %v554, 0.35355338
        %v560 = vld [vmem:[%s475] sm:$0xf]
        %v561 = vld [vmem:[%s475 + $0x4] sm:$0xf]
        %v562 = vld [vmem:[%s475 + $0x8] sm:$0xf]
        %v563 = vld [vmem:[%s475 + $0xc] sm:$0xf]
        %v564 = vld [vmem:[%s486] sm:$0x1]
        %v566 = vlaneseq
        %v567 = vshrl.u32 %v566, 7
        %v568 = vsub.s32 0, %v567
        %v569 = vrot.slane %v564, %v568
        %v575 = vunpack.c.l.b16 %v560
        %v576 = vunpack.c.l.b16 %v561
        %v577 = vunpack.c.l.b16 %v562
        %v578 = vunpack.c.l.b16 %v563
        %v579 = vpack.c.b16 %v576, %v575
        %v580 = vpack.c.b16 %v578, %v577
        %583 = vmatprep.subr.bf16.mxu0 0
        %584 = vmatpush1.bf16.msra.mxu0 0
        %585 = vmatprep.subr.bf16.mxu0 0
        %586 = vmatpush1.bf16.msra.mxu0 0
        %587 = vmatprep.subr.bf16.mxu0 0
        %588 = vmatpush1.bf16.msra.mxu0 0
        %589 = vmatprep.subr.bf16.mxu0 0
        %590 = vmatpush1.bf16.msra.mxu0 0
        %591 = vmatprep.subr.bf16.mxu0 0
        %592 = vmatpush1.bf16.msra.mxu0 0
        %593 = vmatprep.subr.bf16.mxu0 0
        %594 = vmatpush1.bf16.msra.mxu0 0
        %595 = vmatprep.subr.bf16.mxu0 0
        %596 = vmatpush1.bf16.msra.mxu0 %v580
        %597 = vmatprep.subr.bf16.mxu0 0
        %598 = vmatpush1.bf16.msra.mxu0 %v579
        %599 = vmatprep.subr.bf16.mxu0 0
        %600 = vmatpush2.bf16.msra.mxu0 0
        %601 = vmatprep.subr.bf16.mxu0 0
        %602 = vmatpush2.bf16.msra.mxu0 0
        %603 = vmatprep.subr.bf16.mxu0 0
        %604 = vmatpush2.bf16.msra.mxu0 0
        %605 = vmatprep.subr.bf16.mxu0 0
        %606 = vmatpush2.bf16.msra.mxu0 0
        %607 = vmatprep.subr.bf16.mxu0 0
        %608 = vmatpush2.bf16.msra.mxu0 0
        %609 = vmatprep.subr.bf16.mxu0 0
        %610 = vmatpush2.bf16.msra.mxu0 0
        %611 = vmatprep.subr.bf16.mxu0 0
        %612 = vmatpush2.bf16.msra.mxu0 0
        %613 = vmatprep.subr.bf16.mxu0 0
        %614 = vmatpush2.bf16.msra.mxu0 0
        %615 = vmatprep.mubr.bf16.mxu0 0
        %616 = vmatmul.mubr.bf16.gmra.mxu0 %v517
        %v617 = vpop.f32.mrf.mxu0
        %v618 = vadd.f32 %v569, %v617
        %v619 = vpop.f32.mrf.mxu0
        %v620 = vpop.f32.mrf.mxu0
        %v621 = vpop.f32.mrf.mxu0
        %622 = vdwg.mxu0
        %v623 = vld [vmem:[%s480] sm:$0xf]
        %v624 = vld [vmem:[%s480 + $0x4] sm:$0xf]
        %v625 = vld [vmem:[%s480 + $0x8] sm:$0xf]
        %v626 = vld [vmem:[%s480 + $0xc] sm:$0xf]
        %v627 = vld [vmem:[%s489] sm:$0x1]
        %v629 = vlaneseq
        %v630 = vshrl.u32 %v629, 7
        %v631 = vsub.s32 0, %v630
        %v632 = vrot.slane %v627, %v631
        %v638 = vunpack.c.l.b16 %v623
        %v639 = vunpack.c.l.b16 %v624
        %v640 = vunpack.c.l.b16 %v625
        %v641 = vunpack.c.l.b16 %v626
        %v642 = vpack.c.b16 %v639, %v638
        %v643 = vpack.c.b16 %v641, %v640
        %646 = vmatprep.subr.bf16.mxu0 0
        %647 = vmatpush1.bf16.msra.mxu0 0
        %648 = vmatprep.subr.bf16.mxu0 0
        %649 = vmatpush1.bf16.msra.mxu0 0
        %650 = vmatprep.subr.bf16.mxu0 0
        %651 = vmatpush1.bf16.msra.mxu0 0
        %652 = vmatprep.subr.bf16.mxu0 0
        %653 = vmatpush1.bf16.msra.mxu0 0
        %654 = vmatprep.subr.bf16.mxu0 0
        %655 = vmatpush1.bf16.msra.mxu0 0
        %656 = vmatprep.subr.bf16.mxu0 0
        %657 = vmatpush1.bf16.msra.mxu0 0
        %658 = vmatprep.subr.bf16.mxu0 0
        %659 = vmatpush1.bf16.msra.mxu0 %v643
        %660 = vmatprep.subr.bf16.mxu0 0
        %661 = vmatpush1.bf16.msra.mxu0 %v642
        %662 = vmatprep.subr.bf16.mxu0 0
        %663 = vmatpush2.bf16.msra.mxu0 0
        %664 = vmatprep.subr.bf16.mxu0 0
        %665 = vmatpush2.bf16.msra.mxu0 0
        %666 = vmatprep.subr.bf16.mxu0 0
        %667 = vmatpush2.bf16.msra.mxu0 0
        %668 = vmatprep.subr.bf16.mxu0 0
        %669 = vmatpush2.bf16.msra.mxu0 0
        %670 = vmatprep.subr.bf16.mxu0 0
        %671 = vmatpush2.bf16.msra.mxu0 0
        %672 = vmatprep.subr.bf16.mxu0 0
        %673 = vmatpush2.bf16.msra.mxu0 0
        %674 = vmatprep.subr.bf16.mxu0 0
        %675 = vmatpush2.bf16.msra.mxu0 0
        %676 = vmatprep.subr.bf16.mxu0 0
        %677 = vmatpush2.bf16.msra.mxu0 0
        %678 = vmatprep.mubr.bf16.mxu0 0
        %679 = vmatmul.mubr.bf16.gmra.mxu0 %v517
        %v680 = vpop.f32.mrf.mxu0
        %v681 = vadd.f32 %v632, %v680
        %v682 = vpop.f32.mrf.mxu0
        %v683 = vpop.f32.mrf.mxu0
        %v684 = vpop.f32.mrf.mxu0
        %685 = vdwg.mxu0
        %v686 = vpack.c.bf16 %v559, %v559
        %vm687 = vcmask 60416
        %688 = vst.msk [vmem:[%s444] sm:$0xf] %vm687, %v686
        %v689 = vpack.c.bf16 %v618, %v618
        %690 = vst.msk [vmem:[%s451] sm:$0xf] %vm687, %v689
        %v691 = vpack.c.bf16 %v681, %v681
        %692 = vst.msk [vmem:[%s458] sm:$0xf] %vm687, %v691
        %s693 = sand.u32 %s242, 1
        %s694 = scalar_lea.sflag [#allocation3], %s693
        %s695 = sand.u32 %s242, 1
        %s696 = smul.addr %s695, 4
        %s697 = scalar_lea.vmem [#allocation2], %s696
        %s698 = sand.u32 %s27, 1
        %s699 = scalar_lea.sflag [#allocation5], %s698
        %s700 = sand.u32 %s272, 1
        %s701 = smul.addr %s700, 4
        %s702 = scalar_lea.vmem [#allocation4], %s701
        %s703 = sand.u32 %s27, 1
        %s704 = scalar_lea.sflag [#allocation5], %s703
        %s705 = sand.u32 %s302, 1
        %s706 = smul.addr %s705, 4
        %s707 = scalar_lea.vmem [#allocation6], %s706
        // Predicated region
        $region49: #{tpu_custom_call.1} parent=47 // pred_check
          %p708 = pneg %p252
        $region50: #{tpu_custom_call.1} parent=47 // pred_check_branch
          %710 = sbr.rel (%p708) target = $region52
        $region51: #{tpu_custom_call.1} parent=47 // pred_region
          %s712 = ssub.s32 64, 64
          %713 = vsyncadd %s694, %s712
          %s714 = sadd.s32 %s33, %s34
          %s715 = smul.addr %s32, 4
          %s716 = sadd.s32 %s714, %s715
          %s717 = smul.addr %s716, 64
          %s718 = scalar_lea.hbm %s7, %s717
          %s720 = sshll.u32 %s697, 4
          %s721 = int_to_ptr.vmem [resolvable:$true] %s720
          %723 = dma.vmem_to_hbm [thread:$0]  %s721, 64, %s718, %s694
        $region52: #{tpu_custom_call.1} parent=47 // pred_fallthru
          _
        // Predicated region
        $region53: #{tpu_custom_call.1} parent=47 // pred_check
          %p724 = pneg %p282
        $region54: #{tpu_custom_call.1} parent=47 // pred_check_branch
          %726 = sbr.rel (%p724) target = $region56
        $region55: #{tpu_custom_call.1} parent=47 // pred_region
          %s728 = ssub.s32 64, 64
          %729 = vsyncadd %s699, %s728
          %s730 = sadd.s32 %s33, %s34
          %s731 = smul.addr %s32, 4
          %s732 = sadd.s32 %s730, %s731
          %s733 = smul.addr %s732, 64
          %s734 = scalar_lea.hbm %s8, %s733
          %s736 = sshll.u32 %s702, 4
          %s737 = int_to_ptr.vmem [resolvable:$true] %s736
          %739 = dma.vmem_to_hbm [thread:$0]  %s737, 64, %s734, %s699
        $region56: #{tpu_custom_call.1} parent=47 // pred_fallthru
          _
        // Predicated region
        $region57: #{tpu_custom_call.1} parent=47 // pred_check
          %p740 = pneg %p312
        $region58: #{tpu_custom_call.1} parent=47 // pred_check_branch
          %742 = sbr.rel (%p740) target = $region60
        $region59: #{tpu_custom_call.1} parent=47 // pred_region
          %s744 = ssub.s32 64, 64
          %745 = vsyncadd %s704, %s744
          %s746 = sadd.s32 %s33, %s34
          %s747 = smul.addr %s32, 4
          %s748 = sadd.s32 %s746, %s747
          %s749 = smul.addr %s748, 64
          %s750 = scalar_lea.hbm %s9, %s749
          %s752 = sshll.u32 %s707, 4
          %s753 = int_to_ptr.vmem [resolvable:$true] %s752
          %755 = dma.vmem_to_hbm [thread:$0]  %s753, 64, %s750, %s704
        $region60: #{tpu_custom_call.1} parent=47 // pred_fallthru
          _
      $region48: #{tpu_custom_call.1} parent=5 // pred_fallthru
        _
      %p756 = scmp.le.s32.totalorder 2, %s22
      // Predicated region
      $region61: #{tpu_custom_call.1} parent=5 // pred_check
        %p757 = pneg %p756
      $region62: #{tpu_custom_call.1} parent=5 // pred_check_branch
        %759 = sbr.rel (%p757) target = $region64
      $region63: #{tpu_custom_call.1} parent=5 // pred_region
        %s760 = ssub.s32 %s22, 2
        // Predicated region
        $region65: #{tpu_custom_call.1} parent=63 // pred_check
          %p761 = pneg %p258
        $region66: #{tpu_custom_call.1} parent=63 // pred_check_branch
          %763 = sbr.rel (%p761) target = $region68
        $region67: #{tpu_custom_call.1} parent=63 // pred_region
          %s764 = sand.u32 %s243, 1
          %s765 = scalar_lea.sflag [#allocation3], %s764
          %s766 = sand.u32 %s243, 1
          %s767 = smul.addr %s766, 4
          %s768 = scalar_lea.vmem [#allocation2], %s767
          %769 = dma.done %s765, 64
        $region68: #{tpu_custom_call.1} parent=63 // pred_fallthru
          _
        // Predicated region
        $region69: #{tpu_custom_call.1} parent=63 // pred_check
          %p770 = pneg %p288
        $region70: #{tpu_custom_call.1} parent=63 // pred_check_branch
          %772 = sbr.rel (%p770) target = $region72
        $region71: #{tpu_custom_call.1} parent=63 // pred_region
          %s773 = sand.u32 %s28, 1
          %s774 = scalar_lea.sflag [#allocation5], %s773
          %s775 = sand.u32 %s273, 1
          %s776 = smul.addr %s775, 4
          %s777 = scalar_lea.vmem [#allocation4], %s776
          %778 = dma.done %s774, 64
        $region72: #{tpu_custom_call.1} parent=63 // pred_fallthru
          _
        // Predicated region
        $region73: #{tpu_custom_call.1} parent=63 // pred_check
          %p779 = pneg %p318
        $region74: #{tpu_custom_call.1} parent=63 // pred_check_branch
          %781 = sbr.rel (%p779) target = $region76
        $region75: #{tpu_custom_call.1} parent=63 // pred_region
          %s782 = sand.u32 %s28, 1
          %s783 = scalar_lea.sflag [#allocation5], %s782
          %s784 = sand.u32 %s303, 1
          %s785 = smul.addr %s784, 4
          %s786 = scalar_lea.vmem [#allocation6], %s785
          %787 = dma.done %s783, 64
        $region76: #{tpu_custom_call.1} parent=63 // pred_fallthru
          _
      $region64: #{tpu_custom_call.1} parent=5 // pred_fallthru
        _
    $region6: #{tpu_custom_call.1} parent=1 // loop_footer
      %s26 = sadd.s32 1, %s22
    $region7: #{tpu_custom_call.1} parent=1 // loop_footer_branch
      %21 = sbr.rel target = $region3
    $region8: #{tpu_custom_call.1} parent=1 // loop_exit
      _
    %788 = vsyncpa [#allocation3], 1
    %s789 = scalar_lea.sflag [#allocation3], 1
    %790 = vsyncpa %s789, 1
    %791 = vsyncpa [#allocation5], 1
    %s792 = scalar_lea.sflag [#allocation5], 1
    %793 = vsyncpa %s792, 1

</llo_original>
